<compile_context>
chip_gen: v7x
topology: tpu7x:2x2x1
jax: 0.10.0
libtpu: 0.0.40
codegen_flags: <defaults>
</compile_context>

<pallas_src>
import jax
import jax.numpy as jnp
from jax.experimental import pallas as pl
from jax.experimental.pallas import tpu as pltpu


def concat_fusion_kernel(x_ref, y_ref, z_ref, w_ref, b_ref, o_ref, cat_ref):
    dx = x_ref.shape[1]
    dy = y_ref.shape[1]
    dz = z_ref.shape[1]
    # Fused concat: stage the [tile_b, input_dim] activation in VMEM scratch so
    # the matmul below is one fully-filled K=input_dim MXU contraction.
    cat_ref[:, 0:dx] = x_ref[...]
    cat_ref[:, dx:dx + dy] = y_ref[...]
    cat_ref[:, dx + dy:dx + dy + dz] = z_ref[...]
    acc = jnp.dot(cat_ref[...], w_ref[...], preferred_element_type=jnp.float32)
    o_ref[...] = (acc + b_ref[...]).astype(o_ref.dtype)  # (1, out) broadcasts


def concat_fusion(x, y, z, wt, bias):
    """Fused equivalent of ConcatFusion.forward.

    x: (B, Dx), y: (B, Dy), z: (B, Dz)  with Dx+Dy+Dz == input_dim
    wt:   (input_dim, output_dim)  -- nn.Linear weight stored pre-transposed
                                      (transpose done ONCE at init, not per call)
    bias: (output_dim,)
    returns (B, output_dim) == cat(x, y, z, dim=1) @ wt + bias
    """
    B = x.shape[0]
    dx, dy, dz = x.shape[1], y.shape[1], z.shape[1]
    in_dim, out_dim = wt.shape
    assert in_dim == dx + dy + dz
    assert bias.shape == (out_dim,)

    # Batch tile: lane/sublane-friendly tile for large batches (weight and
    # bias stay resident across tiles), single block for small batches.
    block_b = B
    for cand in (512, 256, 128):
        if B % cand == 0:
            block_b = cand
            break
    grid = (B // block_b,)

    b2 = bias.reshape(1, out_dim)

    bytes_accessed = (
        (x.size + y.size + z.size + B * out_dim) * x.dtype.itemsize
        + wt.size * wt.dtype.itemsize
        + b2.size * b2.dtype.itemsize
    )

    return pl.pallas_call(
        concat_fusion_kernel,
        out_shape=jax.ShapeDtypeStruct((B, out_dim), x.dtype),
        grid=grid,
        in_specs=[
            pl.BlockSpec((block_b, dx), lambda i: (i, 0)),
            pl.BlockSpec((block_b, dy), lambda i: (i, 0)),
            pl.BlockSpec((block_b, dz), lambda i: (i, 0)),
            pl.BlockSpec((in_dim, out_dim), lambda i: (0, 0)),  # weight: resident
            pl.BlockSpec((1, out_dim), lambda i: (0, 0)),       # bias:   resident
        ],
        out_specs=pl.BlockSpec((block_b, out_dim), lambda i: (i, 0)),
        scratch_shapes=[pltpu.VMEM((block_b, in_dim), x.dtype)],
        compiler_params=pltpu.CompilerParams(
            dimension_semantics=("parallel",),
        ),
        cost_estimate=pl.CostEstimate(
            flops=2 * B * in_dim * out_dim,
            transcendentals=0,
            bytes_accessed=bytes_accessed,
        ),
    )(x, y, z, wt, b2)


if __name__ == "__main__":
    input_dim = 256
    output_dim = 128
    B = 8
    dx, dy, dz = 128, 64, 64  # dx + dy + dz == input_dim

    key = jax.random.PRNGKey(0)
    kx, ky, kz, kw, kb = jax.random.split(key, 5)

    x = jax.random.normal(kx, (B, dx), dtype=jnp.float32)
    y = jax.random.normal(ky, (B, dy), dtype=jnp.float32)
    z = jax.random.normal(kz, (B, dz), dtype=jnp.float32)

    # Deterministic parameter init (synthetic; mimics nn.Linear uniform bound).
    bound = 1.0 / (input_dim ** 0.5)
    weight = jax.random.uniform(kw, (output_dim, input_dim),
                                minval=-bound, maxval=bound, dtype=jnp.float32)
    bias = jax.random.uniform(kb, (output_dim,),
                              minval=-bound, maxval=bound, dtype=jnp.float32)

    # One-time init step (outside the forward path): store the Linear weight
    # pre-transposed so forward never pays a per-call transpose / HBM copy.
    wt = jax.block_until_ready(jnp.asarray(weight.T))  # (input_dim, output_dim)

    out = concat_fusion(x, y, z, wt, bias)
    out = jax.block_until_ready(out)

    # Reference: exact PyTorch semantics in plain JAX.
    ref = jnp.concatenate((x, y, z), axis=1) @ weight.T + bias
    assert out.shape == (B, output_dim)
    assert jnp.allclose(out, ref, atol=1e-4, rtol=1e-4)

    print("KERNEL_OK")
</pallas_src>

<mosaic_0001>
module attributes {stable_mosaic.version = 11 : i64} {
  func.func @concat_fusion_kernel(%arg0: i32, %arg1: memref<8x128xf32, #tpu.memory_space<vmem>>, %arg2: memref<8x64xf32, #tpu.memory_space<vmem>>, %arg3: memref<8x64xf32, #tpu.memory_space<vmem>>, %arg4: memref<256x128xf32, #tpu.memory_space<vmem>>, %arg5: memref<1x128xf32, #tpu.memory_space<vmem>>, %arg6: memref<8x128xf32, #tpu.memory_space<vmem>>, %arg7: memref<8x256xf32, #tpu.memory_space<vmem>>) attributes {dimension_semantics = [#tpu.dimension_semantics<parallel>], iteration_bounds = array<i64: 1>, scalar_prefetch = 0 : i64, scratch_operands = 1 : i64, tpu.core_type = #tpu.core_type<tc>, window_params = [{transform_indices = @transform_0, window_bounds = array<i64: 8, 128>}, {transform_indices = @transform_1, window_bounds = array<i64: 8, 64>}, {transform_indices = @transform_2, window_bounds = array<i64: 8, 64>}, {pipeline_mode = #tpu.pipeline_mode<synchronous>, transform_indices = @transform_3, window_bounds = array<i64: 256, 128>}, {pipeline_mode = #tpu.pipeline_mode<synchronous>, transform_indices = @transform_4, window_bounds = array<i64: 1, 128>}, {transform_indices = @transform_5, window_bounds = array<i64: 8, 128>}]} {
    %c0 = arith.constant 0 : index
    %c0_0 = arith.constant 0 : index
    %0 = vector.load %arg1[%c0, %c0_0] : memref<8x128xf32, #tpu.memory_space<vmem>>, vector<8x128xf32>
    %c0_1 = arith.constant 0 : index
    %c0_2 = arith.constant 0 : index
    %1 = vector.load %arg7[%c0_1, %c0_2] : memref<8x256xf32, #tpu.memory_space<vmem>>, vector<8x128xf32>
    tpu.vector_store %arg7[%c0_1, %c0_2], %0 {strides = array<i32>} : memref<8x256xf32, #tpu.memory_space<vmem>>, vector<8x128xf32>,
    %c0_3 = arith.constant 0 : index
    %c0_4 = arith.constant 0 : index
    %2 = vector.load %arg2[%c0_3, %c0_4] : memref<8x64xf32, #tpu.memory_space<vmem>>, vector<8x64xf32>
    %c0_5 = arith.constant 0 : index
    %c128 = arith.constant 128 : index
    %3 = vector.load %arg7[%c0_5, %c128] : memref<8x256xf32, #tpu.memory_space<vmem>>, vector<8x64xf32>
    tpu.vector_store %arg7[%c0_5, %c128], %2 {strides = array<i32>} : memref<8x256xf32, #tpu.memory_space<vmem>>, vector<8x64xf32>,
    %c0_6 = arith.constant 0 : index
    %c0_7 = arith.constant 0 : index
    %4 = vector.load %arg3[%c0_6, %c0_7] : memref<8x64xf32, #tpu.memory_space<vmem>>, vector<8x64xf32>
    %c0_8 = arith.constant 0 : index
    %c192 = arith.constant 192 : index
    %5 = vector.load %arg7[%c0_8, %c192] : memref<8x256xf32, #tpu.memory_space<vmem>>, vector<8x64xf32>
    tpu.vector_store %arg7[%c0_8, %c192], %4 {strides = array<i32>} : memref<8x256xf32, #tpu.memory_space<vmem>>, vector<8x64xf32>,
    %c0_9 = arith.constant 0 : index
    %c0_10 = arith.constant 0 : index
    %6 = vector.load %arg7[%c0_9, %c0_10] : memref<8x256xf32, #tpu.memory_space<vmem>>, vector<8x256xf32>
    %c0_11 = arith.constant 0 : index
    %c0_12 = arith.constant 0 : index
    %7 = vector.load %arg4[%c0_11, %c0_12] : memref<256x128xf32, #tpu.memory_space<vmem>>, vector<256x128xf32>
    %cst = arith.constant dense<0.000000e+00> : vector<8x128xf32>
    %8 = tpu.matmul %6, %7, %cst {dimension_numbers = #tpu.dot_dimension_numbers<[1], [0], [0], [1], [0, 0, 1, 1], [], []>} : vector<8x256xf32>, vector<256x128xf32>, vector<8x128xf32> -> vector<8x128xf32>
    %c0_13 = arith.constant 0 : index
    %c0_14 = arith.constant 0 : index
    %9 = vector.load %arg5[%c0_13, %c0_14] : memref<1x128xf32, #tpu.memory_space<vmem>>, vector<1x128xf32>
    %10 = vector.broadcast %9 : vector<1x128xf32> to vector<8x128xf32>
    %11 = arith.addf %8, %10 : vector<8x128xf32>
    %c0_15 = arith.constant 0 : index
    %c0_16 = arith.constant 0 : index
    %12 = vector.load %arg6[%c0_15, %c0_16] : memref<8x128xf32, #tpu.memory_space<vmem>>, vector<8x128xf32>
    tpu.vector_store %arg6[%c0_15, %c0_16], %11 {strides = array<i32>} : memref<8x128xf32, #tpu.memory_space<vmem>>, vector<8x128xf32>,
    return
  }
  func.func @transform_0(%arg0: i32) -> (i32, i32) {
    %c0_i32 = arith.constant 0 : i32
    %c0_i32_0 = arith.constant 0 : i32
    return %arg0, %c0_i32 : i32, i32
  }
  func.func @transform_1(%arg0: i32) -> (i32, i32) {
    %c0_i32 = arith.constant 0 : i32
    %c0_i32_0 = arith.constant 0 : i32
    return %arg0, %c0_i32 : i32, i32
  }
  func.func @transform_2(%arg0: i32) -> (i32, i32) {
    %c0_i32 = arith.constant 0 : i32
    %c0_i32_0 = arith.constant 0 : i32
    return %arg0, %c0_i32 : i32, i32
  }
  func.func @transform_3(%arg0: i32) -> (i32, i32) {
    %c0_i32 = arith.constant 0 : i32
    %c0_i32_0 = arith.constant 0 : i32
    %c0_i32_1 = arith.constant 0 : i32
    return %c0_i32, %c0_i32_0 : i32, i32
  }
  func.func @transform_4(%arg0: i32) -> (i32, i32) {
    %c0_i32 = arith.constant 0 : i32
    %c0_i32_0 = arith.constant 0 : i32
    %c0_i32_1 = arith.constant 0 : i32
    return %c0_i32, %c0_i32_0 : i32, i32
  }
  func.func @transform_5(%arg0: i32) -> (i32, i32) {
    %c0_i32 = arith.constant 0 : i32
    %c0_i32_0 = arith.constant 0 : i32
    return %arg0, %c0_i32 : i32, i32
  }
}

</mosaic_0001>

<llo_original>
// kernel: tpu_custom_call.1
$region0: #{tpu_custom_call.1}
  #allocation0 [shape = 'u32[]', space=smem, size = 0x4, offset = 0x4, fixed_abs, tag = 'smem constant byte address 0x4 - core index']
  #allocation1 [shape = 'u32[144,128]{1,0:T(1,128)}', space=vmem, size = 0x12000, scoped, tag = 'internal scratch']
  #allocation2 [shape = 'f32[8,256]{1,0:T(8,128)}', space=vmem, size = 0x2000, scoped, tag = 'scratch operand']
  %s0 = inlined_call_operand.hbm [shape: f32[8,128], index: 0, kind: input, shape index: {}]
  %s1 = inlined_call_operand.hbm [shape: f32[8,64], index: 1, kind: input, shape index: {}]
  %s2 = inlined_call_operand.hbm [shape: f32[8,64], index: 2, kind: input, shape index: {}]
  %s3 = inlined_call_operand.hbm [shape: f32[256,128], index: 3, kind: input, shape index: {}]
  %s4 = inlined_call_operand.vmem [shape: f32[1,128], index: 4, kind: input, shape index: {}]
  %s5 = inlined_call_operand.hbm [shape: f32[8,128], index: 5, kind: output, shape index: {}]
  %s6 = sld [smem:[#allocation0]]
  $region46: #{tpu_custom_call.1} parent=0
    _
  %s8 = ssub.s32 1, %s6
  %s9 = scalar_select 0, %s8, %s6
  $region1: #{tpu_custom_call.1} parent=0
    #allocation3 [shape = 'u8[4096]{0}', space=vmem, size = 0x1000, scoped, tag = 'input window, operand 0, single buffered']
    #allocation4 [shape = 's32[1]{0}', space=sflag, size = 0x4, scoped, tag = 'scoped memory for tpu_custom_call.1']
    #allocation5 [shape = 's32[1]{0}', space=sflag, size = 0x4, scoped, tag = 'scoped memory for tpu_custom_call.1']
    #allocation6 [shape = 'u8[4096]{0}', space=vmem, size = 0x1000, scoped, tag = 'input window, operand 1, single buffered']
    #allocation7 [shape = 's32[1]{0}', space=sflag, size = 0x4, scoped, tag = 'scoped memory for tpu_custom_call.1']
    #allocation8 [shape = 'u8[4096]{0}', space=vmem, size = 0x1000, scoped, tag = 'input window, operand 2, single buffered']
    #allocation9 [shape = 'u8[131072]{0}', space=vmem, size = 0x20000, scoped, tag = 'input window, operand 3, single buffered']
    #allocation10 [shape = 's32[1]{0}', space=sflag, size = 0x4, scoped, tag = 'scoped memory for tpu_custom_call.1']
    #allocation11 [shape = 'u8[4096]{0}', space=vmem, size = 0x1000, scoped, tag = 'output window, operand 0, single buffered']
    %10 = vsyncpa [#allocation4], 0
    %11 = vsyncpa [#allocation7], 0
    %12 = vsyncpa [#allocation10], 0
    %13 = vsyncpa [#allocation5], 0
    // Predicated region
    $region2: #{tpu_custom_call.1} parent=1 // pred_check
      _
    $region3: #{tpu_custom_call.1} parent=1 // pred_check_branch
      %15 = sbr.rel (0) target = $region5
    $region4: #{tpu_custom_call.1} parent=1 // pred_region
      %s17 = ssub.s32 128, 128
      %18 = vsyncadd [#allocation4], %s17
      %s20 = sshll.u32 [#allocation3], 4
      %s21 = int_to_ptr.vmem [resolvable:$true] %s20
      %23 = dma.hbm_to_vmem [thread:$0]  %s0, 128, %s21, [#allocation4]
    $region5: #{tpu_custom_call.1} parent=1 // pred_fallthru
      _
    // Predicated region
    $region6: #{tpu_custom_call.1} parent=1 // pred_check
      _
    $region7: #{tpu_custom_call.1} parent=1 // pred_check_branch
      %25 = sbr.rel (0) target = $region9
    $region8: #{tpu_custom_call.1} parent=1 // pred_region
      %s27 = ssub.s32 128, 128
      %28 = vsyncadd [#allocation7], %s27
      %s30 = sshll.u32 [#allocation6], 4
      %s31 = int_to_ptr.vmem [resolvable:$true] %s30
      %33 = dma.hbm_to_vmem [thread:$0]  %s1, 128, %s31, [#allocation7]
    $region9: #{tpu_custom_call.1} parent=1 // pred_fallthru
      _
    // Predicated region
    $region10: #{tpu_custom_call.1} parent=1 // pred_check
      _
    $region11: #{tpu_custom_call.1} parent=1 // pred_check_branch
      %35 = sbr.rel (0) target = $region13
    $region12: #{tpu_custom_call.1} parent=1 // pred_region
      %s37 = ssub.s32 128, 128
      %38 = vsyncadd [#allocation7], %s37
      %s40 = sshll.u32 [#allocation8], 4
      %s41 = int_to_ptr.vmem [resolvable:$true] %s40
      %43 = dma.hbm_to_vmem [thread:$0]  %s2, 128, %s41, [#allocation7]
    $region13: #{tpu_custom_call.1} parent=1 // pred_fallthru
      _
    // Predicated region
    $region14: #{tpu_custom_call.1} parent=1 // pred_check
      _
    $region15: #{tpu_custom_call.1} parent=1 // pred_check_branch
      %45 = sbr.rel (0) target = $region17
    $region16: #{tpu_custom_call.1} parent=1 // pred_region
      %s47 = ssub.s32 4096, 4096
      %48 = vsyncadd [#allocation10], %s47
      %s49 = sshll.u32 [#allocation9], 4
      %s50 = int_to_ptr.vmem [resolvable:$true] %s49
      %55 = dma.hbm_to_vmem [thread:$0]  %s3, 4096, %s50, [#allocation10], 128, 128, 8
    $region17: #{tpu_custom_call.1} parent=1 // pred_fallthru
      _
    // Predicated region
    $region18: #{tpu_custom_call.1} parent=1 // pred_check
      _
    $region19: #{tpu_custom_call.1} parent=1 // pred_check_branch
      %57 = sbr.rel (0) target = $region21
    $region20: #{tpu_custom_call.1} parent=1 // pred_region
      _
    $region21: #{tpu_custom_call.1} parent=1 // pred_fallthru
      _
    // Predicated region
    $region22: #{tpu_custom_call.1} parent=1 // pred_check
      _
    $region23: #{tpu_custom_call.1} parent=1 // pred_check_branch
      %59 = sbr.rel (0) target = $region25
    $region24: #{tpu_custom_call.1} parent=1 // pred_region
      %60 = dma.done [#allocation4], 128
    $region25: #{tpu_custom_call.1} parent=1 // pred_fallthru
      _
    // Predicated region
    $region26: #{tpu_custom_call.1} parent=1 // pred_check
      _
    $region27: #{tpu_custom_call.1} parent=1 // pred_check_branch
      %62 = sbr.rel (0) target = $region29
    $region28: #{tpu_custom_call.1} parent=1 // pred_region
      %63 = dma.done [#allocation7], 128
    $region29: #{tpu_custom_call.1} parent=1 // pred_fallthru
      _
    // Predicated region
    $region30: #{tpu_custom_call.1} parent=1 // pred_check
      _
    $region31: #{tpu_custom_call.1} parent=1 // pred_check_branch
      %65 = sbr.rel (0) target = $region33
    $region32: #{tpu_custom_call.1} parent=1 // pred_region
      %66 = dma.done [#allocation7], 128
    $region33: #{tpu_custom_call.1} parent=1 // pred_fallthru
      _
    // Predicated region
    $region34: #{tpu_custom_call.1} parent=1 // pred_check
      _
    $region35: #{tpu_custom_call.1} parent=1 // pred_check_branch
      %68 = sbr.rel (0) target = $region37
    $region36: #{tpu_custom_call.1} parent=1 // pred_region
      %69 = dma.done [#allocation10], 4096
    $region37: #{tpu_custom_call.1} parent=1 // pred_fallthru
      _
    %v70 = vld [vmem:[#allocation3] sm:$0xff]
    %71 = vst [vmem:[#allocation2] sm:$0xff] %v70
    %v72 = vld [vmem:[#allocation6] sm:$0xff]
    %vm73 = vcmask 523264
    %74 = vst.msk [vmem:[#allocation2 + $0x8] sm:$0xff] %vm73, %v72
    %v75 = vld [vmem:[#allocation8] sm:$0xff]
    %77 = vrot.lane.b32.xlu0 %v75, 64
    %v78 = vpop.permute.xlu0 %77
    %vm80 = vcmask 1048064
    %81 = vst.msk [vmem:[#allocation2 + $0x8] sm:$0xff] %vm80, %v78
    %v82 = vld [vmem:[#allocation2] sm:$0xff]
    %v83 = vld [vmem:[#allocation2 + $0x8] sm:$0xff]
    %v84 = vld [vmem:[#allocation9] sm:$0xff]
    %v85 = vld [vmem:[#allocation9 + $0x8] sm:$0xff]
    %v86 = vld [vmem:[#allocation9 + $0x10] sm:$0xff]
    %v87 = vld [vmem:[#allocation9 + $0x18] sm:$0xff]
    %v88 = vld [vmem:[#allocation9 + $0x20] sm:$0xff]
    %v89 = vld [vmem:[#allocation9 + $0x28] sm:$0xff]
    %v90 = vld [vmem:[#allocation9 + $0x30] sm:$0xff]
    %v91 = vld [vmem:[#allocation9 + $0x38] sm:$0xff]
    %v92 = vld [vmem:[#allocation9 + $0x40] sm:$0xff]
    %v93 = vld [vmem:[#allocation9 + $0x48] sm:$0xff]
    %v94 = vld [vmem:[#allocation9 + $0x50] sm:$0xff]
    %v95 = vld [vmem:[#allocation9 + $0x58] sm:$0xff]
    %v96 = vld [vmem:[#allocation9 + $0x60] sm:$0xff]
    %v97 = vld [vmem:[#allocation9 + $0x68] sm:$0xff]
    %v98 = vld [vmem:[#allocation9 + $0x70] sm:$0xff]
    %v99 = vld [vmem:[#allocation9 + $0x78] sm:$0xff]
    %v100 = vld [vmem:[#allocation9 + $0x80] sm:$0xff]
    %v101 = vld [vmem:[#allocation9 + $0x88] sm:$0xff]
    %v102 = vld [vmem:[#allocation9 + $0x90] sm:$0xff]
    %v103 = vld [vmem:[#allocation9 + $0x98] sm:$0xff]
    %v104 = vld [vmem:[#allocation9 + $0xa0] sm:$0xff]
    %v105 = vld [vmem:[#allocation9 + $0xa8] sm:$0xff]
    %v106 = vld [vmem:[#allocation9 + $0xb0] sm:$0xff]
    %v107 = vld [vmem:[#allocation9 + $0xb8] sm:$0xff]
    %v108 = vld [vmem:[#allocation9 + $0xc0] sm:$0xff]
    %v109 = vld [vmem:[#allocation9 + $0xc8] sm:$0xff]
    %v110 = vld [vmem:[#allocation9 + $0xd0] sm:$0xff]
    %v111 = vld [vmem:[#allocation9 + $0xd8] sm:$0xff]
    %v112 = vld [vmem:[#allocation9 + $0xe0] sm:$0xff]
    %v113 = vld [vmem:[#allocation9 + $0xe8] sm:$0xff]
    %v114 = vld [vmem:[#allocation9 + $0xf0] sm:$0xff]
    %v115 = vld [vmem:[#allocation9 + $0xf8] sm:$0xff]
    %v116 = vld [vmem:[%s4] sm:$0x1]
    %v118 = vlaneseq
    %v119 = vshrl.u32 %v118, 7
    %v120 = vsub.s32 0, %v119
    %v121 = vrot.slane %v116, %v120
    %123 = vmatprep.subr.mxu0 0.0
    %124 = vmatpush1.msra.mxu0 %v84
    %125 = vmatprep.subr.mxu0 0.0
    %126 = vmatpush1.msra.mxu0 %v85
    %127 = vmatprep.subr.mxu0 0.0
    %128 = vmatpush1.msra.mxu0 %v86
    %129 = vmatprep.subr.mxu0 0.0
    %130 = vmatpush1.msra.mxu0 %v87
    %131 = vmatprep.subr.mxu0 0.0
    %132 = vmatpush1.msra.mxu0 %v88
    %133 = vmatprep.subr.mxu0 0.0
    %134 = vmatpush1.msra.mxu0 %v89
    %135 = vmatprep.subr.mxu0 0.0
    %136 = vmatpush1.msra.mxu0 %v90
    %137 = vmatprep.subr.mxu0 0.0
    %138 = vmatpush1.msra.mxu0 %v91
    %139 = vmatprep.subr.mxu0 0.0
    %140 = vmatpush1.msra.mxu0 %v92
    %141 = vmatprep.subr.mxu0 0.0
    %142 = vmatpush1.msra.mxu0 %v93
    %143 = vmatprep.subr.mxu0 0.0
    %144 = vmatpush1.msra.mxu0 %v94
    %145 = vmatprep.subr.mxu0 0.0
    %146 = vmatpush1.msra.mxu0 %v95
    %147 = vmatprep.subr.mxu0 0.0
    %148 = vmatpush1.msra.mxu0 %v96
    %149 = vmatprep.subr.mxu0 0.0
    %150 = vmatpush1.msra.mxu0 %v97
    %151 = vmatprep.subr.mxu0 0.0
    %152 = vmatpush1.msra.mxu0 %v98
    %153 = vmatprep.subr.mxu0 0.0
    %154 = vmatpush1.msra.mxu0 %v99
    %155 = vmatprep.subr.mxu0 0.0
    %156 = vmatpush1.msra.mxu0 %v100
    %157 = vmatprep.subr.mxu0 0.0
    %158 = vmatpush1.msra.mxu0 %v101
    %159 = vmatprep.subr.mxu0 0.0
    %160 = vmatpush1.msra.mxu0 %v102
    %161 = vmatprep.subr.mxu0 0.0
    %162 = vmatpush1.msra.mxu0 %v103
    %163 = vmatprep.subr.mxu0 0.0
    %164 = vmatpush1.msra.mxu0 %v104
    %165 = vmatprep.subr.mxu0 0.0
    %166 = vmatpush1.msra.mxu0 %v105
    %167 = vmatprep.subr.mxu0 0.0
    %168 = vmatpush1.msra.mxu0 %v106
    %169 = vmatprep.subr.mxu0 0.0
    %170 = vmatpush1.msra.mxu0 %v107
    %171 = vmatprep.subr.mxu0 0.0
    %172 = vmatpush1.msra.mxu0 %v108
    %173 = vmatprep.subr.mxu0 0.0
    %174 = vmatpush1.msra.mxu0 %v109
    %175 = vmatprep.subr.mxu0 0.0
    %176 = vmatpush1.msra.mxu0 %v110
    %177 = vmatprep.subr.mxu0 0.0
    %178 = vmatpush1.msra.mxu0 %v111
    %179 = vmatprep.subr.mxu0 0.0
    %180 = vmatpush1.msra.mxu0 %v112
    %181 = vmatprep.subr.mxu0 0.0
    %182 = vmatpush1.msra.mxu0 %v113
    %183 = vmatprep.subr.mxu0 0.0
    %184 = vmatpush1.msra.mxu0 %v114
    %185 = vmatprep.subr.mxu0 0.0
    %186 = vmatpush1.msra.mxu0 %v115
    %187 = vmatprep.mubr.f32.mxu0 %v83
    %188 = vmatmul.mubr.f32.gmra.mrb[0].mxu0 %v82
    %v189 = vpop.f32.mrb[0].mxu0
    %v190 = vadd.f32 %v121, %v189
    %v191 = vpop.f32.mrb[0].mxu0
    %192 = vdwg.mxu0
    %193 = vst [vmem:[#allocation11] sm:$0xff] %v190
    // Predicated region
    $region38: #{tpu_custom_call.1} parent=1 // pred_check
      _
    $region39: #{tpu_custom_call.1} parent=1 // pred_check_branch
      %195 = sbr.rel (0) target = $region41
    $region40: #{tpu_custom_call.1} parent=1 // pred_region
      %s197 = ssub.s32 128, 128
      %198 = vsyncadd [#allocation5], %s197
      %s200 = sshll.u32 [#allocation11], 4
      %s201 = int_to_ptr.vmem [resolvable:$true] %s200
      %203 = dma.vmem_to_hbm [thread:$0]  %s201, 128, %s5, [#allocation5]
    $region41: #{tpu_custom_call.1} parent=1 // pred_fallthru
      _
    // Predicated region
    $region42: #{tpu_custom_call.1} parent=1 // pred_check
      _
    $region43: #{tpu_custom_call.1} parent=1 // pred_check_branch
      %205 = sbr.rel (0) target = $region45
    $region44: #{tpu_custom_call.1} parent=1 // pred_region
      %206 = dma.done [#allocation5], 128
    $region45: #{tpu_custom_call.1} parent=1 // pred_fallthru
      _
    %207 = vsyncpa [#allocation4], 1
    %208 = vsyncpa [#allocation7], 1
    %209 = vsyncpa [#allocation10], 1
    %210 = vsyncpa [#allocation5], 1

</llo_original>
